<compile_context>
chip_gen: v7x
topology: tpu7x:2x2x1
jax: 0.10.0
libtpu: 0.0.40
codegen_flags: <defaults>
</compile_context>

<pallas_src>
import jax
import jax.numpy as jnp
from jax.experimental import pallas as pl
from jax.experimental.pallas import tpu as pltpu  # noqa: F401  (VMEM scratch in the seq>1 variant)

_LANES = 128


def _round_up(n, m):
    return ((n + m - 1) // m) * m


def _make_gru_kernel(B, H, HP, O, OP, use_mxu_head):
    """Builds the fused GRU-cell + FC-head kernel (all shape params static)."""

    def body(x_ref, w_ref, p_ref, fcw_ref, out_ref):
        x = x_ref[...]                                     # (B, I+1), ones column appended

        # One packed MXU matmul for all three gates. Gate biases are folded into
        # the last row of w_ref (picked up by the ones column of x).
        g = jnp.dot(x, w_ref[...], preferred_element_type=jnp.float32)   # (B, 3*HP)
        g_r = g[:, 0 * HP:1 * HP]                          # lane offsets 0/HP/2HP are
        g_z = g[:, 1 * HP:2 * HP]                          # multiples of 128 -> aligned
        g_n = g[:, 2 * HP:3 * HP]

        b_hn = p_ref[0:1, 0:HP]                            # (1, HP), zero past lane H

        # h0 == 0  =>  hidden-side matmul is identically zero; only b_hh survives
        # (b_hr/b_hz folded into the matmul bias row, b_hn scaled by r here).
        r = jax.nn.sigmoid(g_r)
        z = jax.nn.sigmoid(g_z)
        n = jnp.tanh(g_n + r * b_hn)
        h1 = (1.0 - z) * n                                 # (B, HP); padded lanes == 0

        fc_b_row = p_ref[7:8, 0:OP]                        # (1, OP), fc_b at lanes [0, O)

        if use_mxu_head:
            # Larger O: single MXU matmul straight into the lane-dense slab.
            out = jnp.dot(h1, fcw_ref[...],
                          preferred_element_type=jnp.float32) + fc_b_row
        else:
            # Tiny O (default O = 1): VPU multiply + lane reduce; no padded MXU pass.
            cols = [jnp.sum(h1 * p_ref[1 + o:2 + o, 0:HP], axis=-1, keepdims=True)
                    for o in range(O)]                     # each (B, 1)
            if O == 1:
                out = jnp.broadcast_to(cols[0], (B, OP)) + fc_b_row
            else:
                out = jnp.concatenate(cols, axis=-1)       # (B, O)
                out = jnp.concatenate(
                    [out, jnp.zeros((B, OP - O), jnp.float32)], axis=-1) + fc_b_row

        out_ref[...] = out.astype(out_ref.dtype)           # dense (B, OP) store

    if use_mxu_head:
        def kernel(x_ref, w_ref, p_ref, fcw_ref, out_ref):
            body(x_ref, w_ref, p_ref, fcw_ref, out_ref)
    else:
        def kernel(x_ref, w_ref, p_ref, out_ref):
            body(x_ref, w_ref, p_ref, None, out_ref)
    return kernel


def gru_forward(x, w_ih, w_hh, b_ih, b_hh, fc_w, fc_b):
    """x: (B, input_size) -> (B, output_size). Matches GRU.forward (seq_len=1, h0=0).

    w_hh is accepted for API parity with the PyTorch module but is NOT sent to
    the kernel: with h0 == 0 only b_hh contributes to the cell update.
    """
    B, I = x.shape
    O, H = fc_w.shape
    assert w_ih.shape == (3 * H, I) and w_hh.shape == (3 * H, H)
    assert b_ih.shape == (3 * H,) and b_hh.shape == (3 * H,) and fc_b.shape == (O,)

    f32 = jnp.float32
    HP = _round_up(H, _LANES)                 # per-gate lane-aligned width
    OP = _round_up(O, _LANES)                 # lane-dense output slab width
    PW = max(HP, OP)                          # small-params slab lane width
    I1 = I + 1                                # ones column folds the gate biases

    # --- input with ones column (bias fold) ---------------------------------
    x_aug = jnp.concatenate([x.astype(f32), jnp.ones((B, 1), f32)], axis=-1)   # (B, I1)

    # --- packed gate weight: (I1, 3*HP); gate g at lanes [g*HP, g*HP+H) ------
    gate_bias = (
        b_ih[0 * H:1 * H] + b_hh[0 * H:1 * H],    # r: b_ir + b_hr   (h0 == 0)
        b_ih[1 * H:2 * H] + b_hh[1 * H:2 * H],    # z: b_iz + b_hz
        b_ih[2 * H:3 * H],                        # n: b_in  (b_hn kept separate, r-scaled)
    )
    w_packed = jnp.zeros((I1, 3 * HP), f32)
    for g in range(3):
        w_g_t = w_ih[g * H:(g + 1) * H, :].T.astype(f32)            # (I, H)
        w_packed = w_packed.at[:I, g * HP:g * HP + H].set(w_g_t)
        w_packed = w_packed.at[I, g * HP:g * HP + H].set(gate_bias[g].astype(f32))

    # --- small-params slab (8, PW): row0=b_hn, rows1..O=fc_w rows, row7=fc_b --
    use_mxu_head = O > 6
    slab = jnp.zeros((8, PW), f32)
    slab = slab.at[0, :H].set(b_hh[2 * H:3 * H].astype(f32))
    if not use_mxu_head:
        slab = slab.at[1:1 + O, :H].set(fc_w.astype(f32))
    slab = slab.at[7, :O].set(fc_b.astype(f32))

    args = [x_aug, w_packed, slab]
    if use_mxu_head:
        fcw_t = jnp.zeros((HP, OP), f32).at[:H, :O].set(fc_w.T.astype(f32))
        args.append(fcw_t)

    kernel = _make_gru_kernel(B, H, HP, O, OP, use_mxu_head)

    full = lambda a: pl.BlockSpec(a.shape, lambda: (0,) * a.ndim)
    out_padded = pl.pallas_call(
        kernel,
        out_shape=jax.ShapeDtypeStruct((B, OP), jnp.float32),
        grid=(),
        in_specs=[full(a) for a in args],
        out_specs=pl.BlockSpec((B, OP), lambda: (0, 0)),
    )(*args)
    return out_padded[:, :O]


def init_params(key, input_size, hidden_size, output_size=1):
    """Deterministic init mimicking PyTorch's U(-1/sqrt(H), 1/sqrt(H))."""
    k = 1.0 / jnp.sqrt(jnp.float32(hidden_size))
    keys = jax.random.split(key, 6)
    w_ih = jax.random.uniform(keys[0], (3 * hidden_size, input_size), jnp.float32, -k, k)
    w_hh = jax.random.uniform(keys[1], (3 * hidden_size, hidden_size), jnp.float32, -k, k)
    b_ih = jax.random.uniform(keys[2], (3 * hidden_size,), jnp.float32, -k, k)
    b_hh = jax.random.uniform(keys[3], (3 * hidden_size,), jnp.float32, -k, k)
    fc_w = jax.random.uniform(keys[4], (output_size, hidden_size), jnp.float32, -k, k)
    fc_b = jax.random.uniform(keys[5], (output_size,), jnp.float32, -k, k)
    return w_ih, w_hh, b_ih, b_hh, fc_w, fc_b


if __name__ == "__main__":
    batch, input_size, hidden_size, output_size = 8, 16, 32, 1

    key = jax.random.PRNGKey(0)
    kx, kp = jax.random.split(key)
    x = jax.random.normal(kx, (batch, input_size), dtype=jnp.float32)
    params = init_params(kp, input_size, hidden_size, output_size)

    out = gru_forward(x, *params)
    jax.block_until_ready(out)
    assert out.shape == (batch, output_size)

    # Pure-JAX reference (exact PyTorch GRU-cell math with h0 = 0, seq_len = 1).
    w_ih, w_hh, b_ih, b_hh, fc_w, fc_b = params
    H = hidden_size
    gi = x @ w_ih.T + b_ih                                 # (B, 3H)
    gh = b_hh[None, :]                                     # h0 = 0 -> just b_hh
    r = jax.nn.sigmoid(gi[:, :H] + gh[:, :H])
    z = jax.nn.sigmoid(gi[:, H:2 * H] + gh[:, H:2 * H])
    n = jnp.tanh(gi[:, 2 * H:] + r * gh[:, 2 * H:])
    h1 = (1.0 - z) * n
    ref = h1 @ fc_w.T + fc_b
    assert jnp.allclose(out, ref, atol=1e-5, rtol=1e-5), (out, ref)

    print("KERNEL_OK")
</pallas_src>

<mosaic_0001>
module attributes {stable_mosaic.version = 11 : i64} {
  func.func @kernel(%arg0: memref<8x17xf32, #tpu.memory_space<vmem>>, %arg1: memref<17x384xf32, #tpu.memory_space<vmem>>, %arg2: memref<8x128xf32, #tpu.memory_space<vmem>>, %arg3: memref<8x128xf32, #tpu.memory_space<vmem>>) attributes {dimension_semantics = [], scalar_prefetch = 0 : i64, scratch_operands = 0 : i64, tpu.core_type = #tpu.core_type<tc>} {
    %c0 = arith.constant 0 : index
    %c0_0 = arith.constant 0 : index
    %0 = vector.load %arg0[%c0, %c0_0] : memref<8x17xf32, #tpu.memory_space<vmem>>, vector<8x17xf32>
    %c0_1 = arith.constant 0 : index
    %c0_2 = arith.constant 0 : index
    %1 = vector.load %arg1[%c0_1, %c0_2] : memref<17x384xf32, #tpu.memory_space<vmem>>, vector<17x384xf32>
    %cst = arith.constant dense<0.000000e+00> : vector<8x384xf32>
    %2 = tpu.matmul %0, %1, %cst {dimension_numbers = #tpu.dot_dimension_numbers<[1], [0], [0], [1], [0, 0, 1, 1], [], []>} : vector<8x17xf32>, vector<17x384xf32>, vector<8x384xf32> -> vector<8x384xf32>
    %3 = vector.extract_strided_slice %2 {offsets = [0, 0], sizes = [8, 128], strides = [1, 1]} : vector<8x384xf32> to vector<8x128xf32>
    %4 = vector.extract_strided_slice %2 {offsets = [0, 128], sizes = [8, 128], strides = [1, 1]} : vector<8x384xf32> to vector<8x128xf32>
    %5 = vector.extract_strided_slice %2 {offsets = [0, 256], sizes = [8, 128], strides = [1, 1]} : vector<8x384xf32> to vector<8x128xf32>
    %c0_3 = arith.constant 0 : index
    %c0_4 = arith.constant 0 : index
    %6 = vector.load %arg2[%c0_3, %c0_4] : memref<8x128xf32, #tpu.memory_space<vmem>>, vector<1x128xf32>
    %7 = arith.negf %3 : vector<8x128xf32>
    %8 = math.exp %7 : vector<8x128xf32>
    %cst_5 = arith.constant 1.000000e+00 : f32
    %9 = vector.broadcast %cst_5 : f32 to vector<8x128xf32>
    %10 = arith.addf %9, %8 : vector<8x128xf32>
    %11 = arith.divf %9, %10 : vector<8x128xf32>
    %12 = arith.negf %4 : vector<8x128xf32>
    %13 = math.exp %12 : vector<8x128xf32>
    %cst_6 = arith.constant 1.000000e+00 : f32
    %14 = vector.broadcast %cst_6 : f32 to vector<8x128xf32>
    %15 = arith.addf %14, %13 : vector<8x128xf32>
    %16 = arith.divf %14, %15 : vector<8x128xf32>
    %17 = vector.broadcast %6 : vector<1x128xf32> to vector<8x128xf32>
    %18 = arith.mulf %11, %17 : vector<8x128xf32>
    %19 = arith.addf %5, %18 : vector<8x128xf32>
    %20 = math.tanh %19 : vector<8x128xf32>
    %cst_7 = arith.constant 1.000000e+00 : f32
    %21 = vector.broadcast %cst_7 : f32 to vector<8x128xf32>
    %22 = arith.subf %21, %16 : vector<8x128xf32>
    %23 = arith.mulf %22, %20 : vector<8x128xf32>
    %c7 = arith.constant 7 : index
    %c0_8 = arith.constant 0 : index
    %24 = vector.load %arg2[%c7, %c0_8] : memref<8x128xf32, #tpu.memory_space<vmem>>, vector<1x128xf32>
    %c1 = arith.constant 1 : index
    %c0_9 = arith.constant 0 : index
    %25 = vector.load %arg2[%c1, %c0_9] : memref<8x128xf32, #tpu.memory_space<vmem>>, vector<1x128xf32>
    %26 = vector.broadcast %25 : vector<1x128xf32> to vector<8x128xf32>
    %27 = arith.mulf %23, %26 : vector<8x128xf32>
    %cst_10 = arith.constant dense<0.000000e+00> : vector<8xf32>
    %28 = vector.multi_reduction <add>, %27, %cst_10 [1] : vector<8x128xf32> to vector<8xf32>
    %29 = vector.shape_cast %28 : vector<8xf32> to vector<8x1xf32>
    %30 = vector.shape_cast %29 : vector<8x1xf32> to vector<8x1xf32>
    %31 = vector.broadcast %30 : vector<8x1xf32> to vector<8x128xf32>
    %32 = vector.broadcast %24 : vector<1x128xf32> to vector<8x128xf32>
    %33 = arith.addf %31, %32 : vector<8x128xf32>
    %c0_11 = arith.constant 0 : index
    %c0_12 = arith.constant 0 : index
    %34 = vector.load %arg3[%c0_11, %c0_12] : memref<8x128xf32, #tpu.memory_space<vmem>>, vector<8x128xf32>
    tpu.vector_store %arg3[%c0_11, %c0_12], %33 {strides = array<i32>} : memref<8x128xf32, #tpu.memory_space<vmem>>, vector<8x128xf32>,
    return
  }
}

</mosaic_0001>

<llo_original>
// kernel: tpu_custom_call.1
$region0: #{tpu_custom_call.1}
  #allocation0 [shape = 'u32[]', space=smem, size = 0x4, offset = 0x4, fixed_abs, tag = 'smem constant byte address 0x4 - core index']
  #allocation1 [shape = 'u32[144,128]{1,0:T(1,128)}', space=vmem, size = 0x12000, scoped, tag = 'internal scratch']
  %s0 = inlined_call_operand.hbm [shape: f32[8,17], index: 0, kind: input, shape index: {}]
  %s1 = inlined_call_operand.hbm [shape: f32[17,384], index: 1, kind: input, shape index: {}]
  %s2 = inlined_call_operand.hbm [shape: f32[8,128], index: 2, kind: input, shape index: {}]
  %s3 = inlined_call_operand.hbm [shape: f32[8,128], index: 3, kind: output, shape index: {}]
  %s4 = sld [smem:[#allocation0]]
  $region34: #{tpu_custom_call.1} parent=0
    _
  %s6 = ssub.s32 1, %s4
  %s7 = scalar_select 0, %s6, %s4
  $region1: #{tpu_custom_call.1} parent=0
    #allocation2 [shape = 'u8[4096]{0}', space=vmem, size = 0x1000, scoped, tag = 'input window, operand 0, single buffered']
    #allocation3 [shape = 's32[1]{0}', space=sflag, size = 0x4, scoped, tag = 'scoped memory for tpu_custom_call.1']
    #allocation4 [shape = 's32[1]{0}', space=sflag, size = 0x4, scoped, tag = 'scoped memory for tpu_custom_call.1']
    #allocation5 [shape = 'u8[36864]{0}', space=vmem, size = 0x9000, scoped, tag = 'input window, operand 1, single buffered']
    #allocation6 [shape = 's32[1]{0}', space=sflag, size = 0x4, scoped, tag = 'scoped memory for tpu_custom_call.1']
    #allocation7 [shape = 'u8[4096]{0}', space=vmem, size = 0x1000, scoped, tag = 'input window, operand 2, single buffered']
    #allocation8 [shape = 'u8[4096]{0}', space=vmem, size = 0x1000, scoped, tag = 'output window, operand 0, single buffered']
    %8 = vsyncpa [#allocation3], 0
    %9 = vsyncpa [#allocation6], 0
    %10 = vsyncpa [#allocation4], 0
    // Predicated region
    $region2: #{tpu_custom_call.1} parent=1 // pred_check
      _
    $region3: #{tpu_custom_call.1} parent=1 // pred_check_branch
      %12 = sbr.rel (0) target = $region5
    $region4: #{tpu_custom_call.1} parent=1 // pred_region
      %s14 = ssub.s32 128, 128
      %15 = vsyncadd [#allocation3], %s14
      %s17 = sshll.u32 [#allocation2], 4
      %s18 = int_to_ptr.vmem [resolvable:$true] %s17
      %20 = dma.hbm_to_vmem [thread:$0]  %s0, 128, %s18, [#allocation3]
    $region5: #{tpu_custom_call.1} parent=1 // pred_fallthru
      _
    // Predicated region
    $region6: #{tpu_custom_call.1} parent=1 // pred_check
      _
    $region7: #{tpu_custom_call.1} parent=1 // pred_check_branch
      %22 = sbr.rel (0) target = $region9
    $region8: #{tpu_custom_call.1} parent=1 // pred_region
      %s24 = ssub.s32 1152, 1152
      %25 = vsyncadd [#allocation6], %s24
      %s26 = sshll.u32 [#allocation5], 4
      %s27 = int_to_ptr.vmem [resolvable:$true] %s26
      %32 = dma.hbm_to_vmem [thread:$0]  %s1, 1152, %s27, [#allocation6], 384, 384, 24
    $region9: #{tpu_custom_call.1} parent=1 // pred_fallthru
      _
    // Predicated region
    $region10: #{tpu_custom_call.1} parent=1 // pred_check
      _
    $region11: #{tpu_custom_call.1} parent=1 // pred_check_branch
      %34 = sbr.rel (0) target = $region13
    $region12: #{tpu_custom_call.1} parent=1 // pred_region
      %s36 = ssub.s32 128, 128
      %37 = vsyncadd [#allocation6], %s36
      %s39 = sshll.u32 [#allocation7], 4
      %s40 = int_to_ptr.vmem [resolvable:$true] %s39
      %42 = dma.hbm_to_vmem [thread:$0]  %s2, 128, %s40, [#allocation6]
    $region13: #{tpu_custom_call.1} parent=1 // pred_fallthru
      _
    // Predicated region
    $region14: #{tpu_custom_call.1} parent=1 // pred_check
      _
    $region15: #{tpu_custom_call.1} parent=1 // pred_check_branch
      %44 = sbr.rel (0) target = $region17
    $region16: #{tpu_custom_call.1} parent=1 // pred_region
      %45 = dma.done [#allocation3], 128
    $region17: #{tpu_custom_call.1} parent=1 // pred_fallthru
      _
    // Predicated region
    $region18: #{tpu_custom_call.1} parent=1 // pred_check
      _
    $region19: #{tpu_custom_call.1} parent=1 // pred_check_branch
      %47 = sbr.rel (0) target = $region21
    $region20: #{tpu_custom_call.1} parent=1 // pred_region
      %48 = dma.done [#allocation6], 1152
    $region21: #{tpu_custom_call.1} parent=1 // pred_fallthru
      _
    // Predicated region
    $region22: #{tpu_custom_call.1} parent=1 // pred_check
      _
    $region23: #{tpu_custom_call.1} parent=1 // pred_check_branch
      %50 = sbr.rel (0) target = $region25
    $region24: #{tpu_custom_call.1} parent=1 // pred_region
      %51 = dma.done [#allocation6], 128
    $region25: #{tpu_custom_call.1} parent=1 // pred_fallthru
      _
    %v52 = vld [vmem:[#allocation2] sm:$0xff]
    %v53 = vld [vmem:[#allocation5] sm:$0xff]
    %v54 = vld [vmem:[#allocation5 + $0x8] sm:$0xff]
    %v55 = vld [vmem:[#allocation5 + $0x10] sm:$0xff]
    %v56 = vld [vmem:[#allocation5 + $0x18] sm:$0xff]
    %v57 = vld [vmem:[#allocation5 + $0x20] sm:$0xff]
    %v58 = vld [vmem:[#allocation5 + $0x28] sm:$0xff]
    %v59 = vld [vmem:[#allocation5 + $0x30] sm:$0x1]
    %v60 = vld [vmem:[#allocation5 + $0x38] sm:$0x1]
    %v61 = vld [vmem:[#allocation5 + $0x40] sm:$0x1]
    %vm62 = vcmask 138240
    %v64 = vsel %vm62, %v52, 0
    %vm66 = vcmask 1040384
    %v68 = vsel %vm66, %v59, 0
    %v71 = vsel %vm66, %v60, 0
    %v74 = vsel %vm66, %v61, 0
    %76 = vmatprep.subr.mxu0 %v54
    %77 = vmatpush1.msra.mxu0 %v53
    %78 = vmatprep.subr.mxu0 %v57
    %79 = vmatpush1.msra.mxu0 %v56
    %80 = vmatprep.subr.mxu0 %v71
    %81 = vmatpush1.msra.mxu0 %v68
    %82 = vmatprep.subr.mxu0 0.0
    %83 = vmatpush1.msra.mxu0 0.0
    %84 = vmatprep.subr.mxu0 0.0
    %85 = vmatpush1.msra.mxu0 0.0
    %86 = vmatprep.subr.mxu0 0.0
    %87 = vmatpush1.msra.mxu0 0.0
    %88 = vmatprep.subr.mxu0 0.0
    %89 = vmatpush1.msra.mxu0 0.0
    %90 = vmatprep.subr.mxu0 0.0
    %91 = vmatpush1.msra.mxu0 0.0
    %92 = vmatprep.subr.mxu0 0.0
    %93 = vmatpush1.msra.mxu0 0.0
    %94 = vmatprep.subr.mxu0 0.0
    %95 = vmatpush1.msra.mxu0 0.0
    %96 = vmatprep.subr.mxu0 0.0
    %97 = vmatpush1.msra.mxu0 0.0
    %98 = vmatprep.subr.mxu0 0.0
    %99 = vmatpush1.msra.mxu0 0.0
    %100 = vmatprep.subr.mxu0 0.0
    %101 = vmatpush1.msra.mxu0 0.0
    %102 = vmatprep.subr.mxu0 0.0
    %103 = vmatpush1.msra.mxu0 0.0
    %104 = vmatprep.subr.mxu0 0.0
    %105 = vmatpush1.msra.mxu0 0.0
    %106 = vmatprep.subr.mxu0 0.0
    %107 = vmatpush1.msra.mxu0 0.0
    %108 = vmatprep.subr.mxu0 0.0
    %109 = vmatpush1.msra.mxu0 0.0
    %110 = vmatprep.subr.mxu0 0.0
    %111 = vmatpush1.msra.mxu0 0.0
    %112 = vmatprep.subr.mxu0 0.0
    %113 = vmatpush1.msra.mxu0 0.0
    %114 = vmatprep.subr.mxu0 0.0
    %115 = vmatpush1.msra.mxu0 0.0
    %116 = vmatprep.subr.mxu0 0.0
    %117 = vmatpush1.msra.mxu0 0.0
    %118 = vmatprep.subr.mxu0 0.0
    %119 = vmatpush1.msra.mxu0 0.0
    %120 = vmatprep.subr.mxu0 0.0
    %121 = vmatpush1.msra.mxu0 0.0
    %122 = vmatprep.subr.mxu0 0.0
    %123 = vmatpush1.msra.mxu0 0.0
    %124 = vmatprep.subr.mxu0 0.0
    %125 = vmatpush1.msra.mxu0 0.0
    %126 = vmatprep.subr.mxu0 0.0
    %127 = vmatpush1.msra.mxu0 0.0
    %128 = vmatprep.subr.mxu0 0.0
    %129 = vmatpush1.msra.mxu0 0.0
    %130 = vmatprep.subr.mxu0 0.0
    %131 = vmatpush1.msra.mxu0 0.0
    %132 = vmatprep.subr.mxu0 0.0
    %133 = vmatpush1.msra.mxu0 0.0
    %134 = vmatprep.subr.mxu0 0.0
    %135 = vmatpush1.msra.mxu0 0.0
    %136 = vmatprep.subr.mxu0 0.0
    %137 = vmatpush1.msra.mxu0 0.0
    %138 = vmatprep.subr.mxu0 0.0
    %139 = vmatpush1.msra.mxu0 0.0
    %140 = vmatprep.mubr.f32.mxu0 0.0
    %141 = vmatmul.mubr.f32.gmra.mrb[0].mxu0 %v64
    %v142 = vpop.f32.mrb[0].mxu0
    %v143 = vadd.f32 0.0, %v142
    %v144 = vpop.f32.mrb[0].mxu0
    %v145 = vadd.f32 0.0, %v144
    %146 = vdwg.mxu0
    %147 = vmatprep.subr.mxu0 0.0
    %148 = vmatpush1.msra.mxu0 %v55
    %149 = vmatprep.subr.mxu0 0.0
    %150 = vmatpush1.msra.mxu0 %v58
    %151 = vmatprep.subr.mxu0 0.0
    %152 = vmatpush1.msra.mxu0 %v74
    %153 = vmatprep.subr.mxu0 0.0
    %154 = vmatpush1.msra.mxu0 0.0
    %155 = vmatprep.subr.mxu0 0.0
    %156 = vmatpush1.msra.mxu0 0.0
    %157 = vmatprep.subr.mxu0 0.0
    %158 = vmatpush1.msra.mxu0 0.0
    %159 = vmatprep.subr.mxu0 0.0
    %160 = vmatpush1.msra.mxu0 0.0
    %161 = vmatprep.subr.mxu0 0.0
    %162 = vmatpush1.msra.mxu0 0.0
    %163 = vmatprep.subr.mxu0 0.0
    %164 = vmatpush1.msra.mxu0 0.0
    %165 = vmatprep.subr.mxu0 0.0
    %166 = vmatpush1.msra.mxu0 0.0
    %167 = vmatprep.subr.mxu0 0.0
    %168 = vmatpush1.msra.mxu0 0.0
    %169 = vmatprep.subr.mxu0 0.0
    %170 = vmatpush1.msra.mxu0 0.0
    %171 = vmatprep.subr.mxu0 0.0
    %172 = vmatpush1.msra.mxu0 0.0
    %173 = vmatprep.subr.mxu0 0.0
    %174 = vmatpush1.msra.mxu0 0.0
    %175 = vmatprep.subr.mxu0 0.0
    %176 = vmatpush1.msra.mxu0 0.0
    %177 = vmatprep.subr.mxu0 0.0
    %178 = vmatpush1.msra.mxu0 0.0
    %179 = vmatprep.subr.mxu0 0.0
    %180 = vmatpush1.msra.mxu0 0.0
    %181 = vmatprep.subr.mxu0 0.0
    %182 = vmatpush1.msra.mxu0 0.0
    %183 = vmatprep.subr.mxu0 0.0
    %184 = vmatpush1.msra.mxu0 0.0
    %185 = vmatprep.subr.mxu0 0.0
    %186 = vmatpush1.msra.mxu0 0.0
    %187 = vmatprep.subr.mxu0 0.0
    %188 = vmatpush1.msra.mxu0 0.0
    %189 = vmatprep.subr.mxu0 0.0
    %190 = vmatpush1.msra.mxu0 0.0
    %191 = vmatprep.subr.mxu0 0.0
    %192 = vmatpush1.msra.mxu0 0.0
    %193 = vmatprep.subr.mxu0 0.0
    %194 = vmatpush1.msra.mxu0 0.0
    %195 = vmatprep.subr.mxu0 0.0
    %196 = vmatpush1.msra.mxu0 0.0
    %197 = vmatprep.subr.mxu0 0.0
    %198 = vmatpush1.msra.mxu0 0.0
    %199 = vmatprep.subr.mxu0 0.0
    %200 = vmatpush1.msra.mxu0 0.0
    %201 = vmatprep.subr.mxu0 0.0
    %202 = vmatpush1.msra.mxu0 0.0
    %203 = vmatprep.subr.mxu0 0.0
    %204 = vmatpush1.msra.mxu0 0.0
    %205 = vmatprep.subr.mxu0 0.0
    %206 = vmatpush1.msra.mxu0 0.0
    %207 = vmatprep.subr.mxu0 0.0
    %208 = vmatpush1.msra.mxu0 0.0
    %209 = vmatprep.subr.mxu0 0.0
    %210 = vmatpush1.msra.mxu0 0.0
    %211 = vmatprep.mubr.f32.mxu0 0.0
    %212 = vmatmul.mubr.f32.gmra.mrb[0].mxu0 %v64
    %v213 = vpop.f32.mrb[0].mxu0
    %v214 = vadd.f32 0.0, %v213
    %v215 = vpop.f32.mrb[0].mxu0
    %216 = vdwg.mxu0
    %v217 = vld [vmem:[#allocation7] sm:$0x1]
    %v218 = vxor.u32 %v143, 2147483648
    %v219 = vmul.f32 %v218, 1.442695
    %v220 = vpow.pop %v219
    %v221 = vadd.f32 %v220, 1.0
    %v222 = vrcp.pop %v221
    %v223 = vmul.f32 1.0, %v222
    %v224 = vxor.u32 %v145, 2147483648
    %v225 = vmul.f32 %v224, 1.442695
    %v226 = vpow.pop %v225
    %v227 = vadd.f32 %v226, 1.0
    %v228 = vrcp.pop %v227
    %v229 = vmul.f32 1.0, %v228
    %v230 = vlaneseq
    %v231 = vshrl.u32 %v230, 7
    %v232 = vsub.s32 0, %v231
    %v233 = vrot.slane %v217, %v232
    %v234 = vmul.f32 %v223, %v233
    %v235 = vadd.f32 %v214, %v234
    %v236 = vtanh.pop %v235
    %v237 = vsub.f32 1.0, %v229
    %v238 = vmul.f32 %v237, %v236
    %v239 = vld [vmem:[#allocation7 + $0x7] sm:$0x1]
    %v240 = vld [vmem:[#allocation7 + $0x1] sm:$0x1]
    %v241 = vlaneseq
    %v242 = vshrl.u32 %v241, 7
    %v243 = vsub.s32 0, %v242
    %v244 = vrot.slane %v240, %v243
    %v245 = vmul.f32 %v238, %v244
    %246 = vadd.xlane.f32.xlu0 %v245
    %v247 = vpop.xlane.xlu0 %246
    %v248 = vlaneseq
    %v249 = vshrl.u32 %v248, 7
    %v250 = vsub.s32 0, %v249
    %v251 = vrot.slane %v239, %v250
    %v252 = vadd.f32 %v247, %v251
    %253 = vst [vmem:[#allocation8] sm:$0xff] %v252
    // Predicated region
    $region26: #{tpu_custom_call.1} parent=1 // pred_check
      _
    $region27: #{tpu_custom_call.1} parent=1 // pred_check_branch
      %255 = sbr.rel (0) target = $region29
    $region28: #{tpu_custom_call.1} parent=1 // pred_region
      %s257 = ssub.s32 128, 128
      %258 = vsyncadd [#allocation4], %s257
      %s260 = sshll.u32 [#allocation8], 4
      %s261 = int_to_ptr.vmem [resolvable:$true] %s260
      %263 = dma.vmem_to_hbm [thread:$0]  %s261, 128, %s3, [#allocation4]
    $region29: #{tpu_custom_call.1} parent=1 // pred_fallthru
      _
    // Predicated region
    $region30: #{tpu_custom_call.1} parent=1 // pred_check
      _
    $region31: #{tpu_custom_call.1} parent=1 // pred_check_branch
      %265 = sbr.rel (0) target = $region33
    $region32: #{tpu_custom_call.1} parent=1 // pred_region
      %266 = dma.done [#allocation4], 128
    $region33: #{tpu_custom_call.1} parent=1 // pred_fallthru
      _
    %267 = vsyncpa [#allocation3], 1
    %268 = vsyncpa [#allocation6], 1
    %269 = vsyncpa [#allocation4], 1

</llo_original>
